<compile_context>
chip_gen: v6e
topology: v6e:2x2x1
jax: 0.10.0
libtpu: 0.0.40
codegen_flags: <defaults>
</compile_context>

<pallas_src>
import functools

import jax
import jax.numpy as jnp
from jax.experimental import pallas as pl
from jax.experimental.pallas import tpu as pltpu

IN_DIM = 1296          # 1296 % 8 == 0, used as a full-extent last/second-last dim
HID_DIM = 256
OUT_DIM = 7
OUT_PAD = 128          # lane-dense output width


def _cdiv(a, b):
    return -(-a // b)


def _round_up(n, m):
    return (n + m - 1) // m * m


def _choose_tb(batch, tb_max):
    """Batch-tile size: multiple of 8, >=2 balanced grid steps when possible."""
    if batch <= 8:
        return 8
    n_tiles = max(2, _cdiv(batch, tb_max))           # >=2 steps for v7x megacore
    return min(tb_max, _round_up(_cdiv(batch, n_tiles), 8))


def _mlp_kernel(x_ref, w1_ref, b1_ref, w2_ref, b2_ref, o_ref):
    # fc1 + ReLU: in-kernel f32->bf16 cast (hidden under the x DMA), bf16 MXU
    # inputs, f32 accumulation.
    x_bf = x_ref[...].astype(jnp.bfloat16)
    h = jnp.dot(x_bf, w1_ref[...], preferred_element_type=jnp.float32)
    h = jnp.maximum(h + b1_ref[...], 0.0)             # [tb, 256] + [1, 256]
    # fc2 + ReLU (output padded to 128 lanes; padded columns are exactly 0).
    y = jnp.dot(h.astype(jnp.bfloat16), w2_ref[...],
                preferred_element_type=jnp.float32)
    o_ref[...] = jnp.maximum(y + b2_ref[...], 0.0)    # [tb, 128] + [1, 128]


def prepare_params(w1, b1, w2, b2):
    """Cast/pad params once.

    Inputs: w1 [1296, 256], b1 [256] or [1, 256], w2 [256, 7], b2 [7] or [1, 7]
    (weights already stored as [in, out], i.e. torch weight transposed).
    """
    w1p = w1.astype(jnp.bfloat16)                               # [1296, 256]
    b1p = jnp.reshape(b1, (1, HID_DIM)).astype(jnp.float32)     # [1, 256]
    w2p = jnp.zeros((HID_DIM, OUT_PAD), jnp.bfloat16)
    w2p = w2p.at[:, :OUT_DIM].set(w2.astype(jnp.bfloat16))      # [256, 128]
    b2p = jnp.zeros((1, OUT_PAD), jnp.float32)
    b2p = b2p.at[:, :OUT_DIM].set(
        jnp.reshape(b2, (1, OUT_DIM)).astype(jnp.float32))      # [1, 128]
    return w1p, b1p, w2p, b2p


@functools.partial(jax.jit, static_argnames=("tb_max",))
def net_forward(x, w1p, b1p, w2p, b2p, *, tb_max=2048):
    """x: [B, 1296] f32 (or bf16); params from prepare_params(). Returns [B, 7] f32."""
    B = x.shape[0]
    tb = _choose_tb(B, tb_max)
    grid = (_cdiv(B, tb),)

    bytes_accessed = (x.size * x.dtype.itemsize
                      + w1p.size * 2 + b1p.size * 4
                      + w2p.size * 2 + b2p.size * 4
                      + B * OUT_PAD * 4)
    flops = 2 * B * IN_DIM * HID_DIM + 2 * B * HID_DIM * OUT_PAD

    out = pl.pallas_call(
        _mlp_kernel,
        out_shape=jax.ShapeDtypeStruct((B, OUT_PAD), jnp.float32),
        grid=grid,
        in_specs=[
            pl.BlockSpec((tb, IN_DIM), lambda i: (i, 0)),         # x tile (pipelined)
            pl.BlockSpec((IN_DIM, HID_DIM), lambda i: (0, 0)),    # w1 (resident)
            pl.BlockSpec((1, HID_DIM), lambda i: (0, 0)),         # b1 (resident)
            pl.BlockSpec((HID_DIM, OUT_PAD), lambda i: (0, 0)),   # w2 (resident)
            pl.BlockSpec((1, OUT_PAD), lambda i: (0, 0)),         # b2 (resident)
        ],
        out_specs=pl.BlockSpec((tb, OUT_PAD), lambda i: (i, 0)),
        compiler_params=pltpu.CompilerParams(
            dimension_semantics=("parallel",),
            vmem_limit_bytes=48 << 20,
        ),
        cost_estimate=pl.CostEstimate(
            flops=flops, transcendentals=0, bytes_accessed=bytes_accessed),
    )(x, w1p, b1p, w2p, b2p)

    return out[:, :OUT_DIM]


def init_params(key):
    """Mimics torch.nn.Linear's U(-1/sqrt(fan_in), 1/sqrt(fan_in)) init."""
    k1, k2, k3, k4 = jax.random.split(key, 4)
    bound1 = 1.0 / jnp.sqrt(IN_DIM)
    bound2 = 1.0 / jnp.sqrt(HID_DIM)
    # Stored as [in, out] (torch weight transposed).
    w1 = jax.random.uniform(k1, (IN_DIM, HID_DIM), jnp.float32, -bound1, bound1)
    b1 = jax.random.uniform(k2, (HID_DIM,), jnp.float32, -bound1, bound1)
    w2 = jax.random.uniform(k3, (HID_DIM, OUT_DIM), jnp.float32, -bound2, bound2)
    b2 = jax.random.uniform(k4, (OUT_DIM,), jnp.float32, -bound2, bound2)
    return w1, b1, w2, b2


if __name__ == "__main__":
    key = jax.random.PRNGKey(0)
    kx, kp = jax.random.split(key)

    B = 8
    x = jax.random.normal(kx, (B, IN_DIM), jnp.float32)
    w1, b1, w2, b2 = init_params(kp)
    w1p, b1p, w2p, b2p = prepare_params(w1, b1, w2, b2)

    out = net_forward(x, w1p, b1p, w2p, b2p)
    out = jax.block_until_ready(out)
    assert out.shape == (B, OUT_DIM)

    # Bit-for-dtype reference (same bf16 rounding as the kernel) -> tight check.
    xb = x.astype(jnp.bfloat16).astype(jnp.float32)
    w1b = w1.astype(jnp.bfloat16).astype(jnp.float32)
    w2b = w2.astype(jnp.bfloat16).astype(jnp.float32)
    h_ref = jnp.maximum(xb @ w1b + b1[None, :], 0.0)
    h_ref = h_ref.astype(jnp.bfloat16).astype(jnp.float32)
    ref_bf16 = jnp.maximum(h_ref @ w2b + b2[None, :], 0.0)
    assert jnp.allclose(out, ref_bf16, atol=2e-3, rtol=2e-3)

    # Full-f32 reference (the original PyTorch semantics) -> loose check.
    ref_f32 = jnp.maximum(
        jnp.maximum(x @ w1 + b1[None, :], 0.0) @ w2 + b2[None, :], 0.0)
    assert jnp.allclose(out, ref_f32, atol=3e-2, rtol=3e-2)

    print("KERNEL_OK")
</pallas_src>

<mosaic_0001>
module attributes {stable_mosaic.version = 11 : i64} {
  func.func @_mlp_kernel(%arg0: i32, %arg1: memref<8x1296xf32, #tpu.memory_space<vmem>>, %arg2: memref<1296x256xbf16, #tpu.memory_space<vmem>>, %arg3: memref<1x256xf32, #tpu.memory_space<vmem>>, %arg4: memref<256x128xbf16, #tpu.memory_space<vmem>>, %arg5: memref<1x128xf32, #tpu.memory_space<vmem>>, %arg6: memref<8x128xf32, #tpu.memory_space<vmem>>) attributes {dimension_semantics = [#tpu.dimension_semantics<parallel>], iteration_bounds = array<i64: 1>, scalar_prefetch = 0 : i64, scratch_operands = 0 : i64, tpu.core_type = #tpu.core_type<tc>, window_params = [{transform_indices = @transform_0, window_bounds = array<i64: 8, 1296>}, {pipeline_mode = #tpu.pipeline_mode<synchronous>, transform_indices = @transform_1, window_bounds = array<i64: 1296, 256>}, {pipeline_mode = #tpu.pipeline_mode<synchronous>, transform_indices = @transform_2, window_bounds = array<i64: 1, 256>}, {pipeline_mode = #tpu.pipeline_mode<synchronous>, transform_indices = @transform_3, window_bounds = array<i64: 256, 128>}, {pipeline_mode = #tpu.pipeline_mode<synchronous>, transform_indices = @transform_4, window_bounds = array<i64: 1, 128>}, {transform_indices = @transform_5, window_bounds = array<i64: 8, 128>}]} {
    %c0 = arith.constant 0 : index
    %c0_0 = arith.constant 0 : index
    %0 = vector.load %arg1[%c0, %c0_0] : memref<8x1296xf32, #tpu.memory_space<vmem>>, vector<8x1296xf32>
    %1 = arith.truncf %0 : vector<8x1296xf32> to vector<8x1296xbf16>
    %c0_1 = arith.constant 0 : index
    %c0_2 = arith.constant 0 : index
    %2 = vector.load %arg2[%c0_1, %c0_2] : memref<1296x256xbf16, #tpu.memory_space<vmem>>, vector<1296x256xbf16>
    %cst = arith.constant dense<0.000000e+00> : vector<8x256xf32>
    %3 = tpu.matmul %1, %2, %cst {dimension_numbers = #tpu.dot_dimension_numbers<[1], [0], [0], [1], [0, 0, 1, 1], [], []>} : vector<8x1296xbf16>, vector<1296x256xbf16>, vector<8x256xf32> -> vector<8x256xf32>
    %c0_3 = arith.constant 0 : index
    %c0_4 = arith.constant 0 : index
    %4 = vector.load %arg3[%c0_3, %c0_4] : memref<1x256xf32, #tpu.memory_space<vmem>>, vector<1x256xf32>
    %5 = vector.broadcast %4 : vector<1x256xf32> to vector<8x256xf32>
    %6 = arith.addf %3, %5 : vector<8x256xf32>
    %cst_5 = arith.constant 0.000000e+00 : f32
    %7 = vector.broadcast %cst_5 : f32 to vector<8x256xf32>
    %8 = arith.maximumf %6, %7 : vector<8x256xf32>
    %9 = arith.truncf %8 : vector<8x256xf32> to vector<8x256xbf16>
    %c0_6 = arith.constant 0 : index
    %c0_7 = arith.constant 0 : index
    %10 = vector.load %arg4[%c0_6, %c0_7] : memref<256x128xbf16, #tpu.memory_space<vmem>>, vector<256x128xbf16>
    %cst_8 = arith.constant dense<0.000000e+00> : vector<8x128xf32>
    %11 = tpu.matmul %9, %10, %cst_8 {dimension_numbers = #tpu.dot_dimension_numbers<[1], [0], [0], [1], [0, 0, 1, 1], [], []>} : vector<8x256xbf16>, vector<256x128xbf16>, vector<8x128xf32> -> vector<8x128xf32>
    %c0_9 = arith.constant 0 : index
    %c0_10 = arith.constant 0 : index
    %12 = vector.load %arg5[%c0_9, %c0_10] : memref<1x128xf32, #tpu.memory_space<vmem>>, vector<1x128xf32>
    %13 = vector.broadcast %12 : vector<1x128xf32> to vector<8x128xf32>
    %14 = arith.addf %11, %13 : vector<8x128xf32>
    %cst_11 = arith.constant 0.000000e+00 : f32
    %15 = vector.broadcast %cst_11 : f32 to vector<8x128xf32>
    %16 = arith.maximumf %14, %15 : vector<8x128xf32>
    %c0_12 = arith.constant 0 : index
    %c0_13 = arith.constant 0 : index
    %17 = vector.load %arg6[%c0_12, %c0_13] : memref<8x128xf32, #tpu.memory_space<vmem>>, vector<8x128xf32>
    tpu.vector_store %arg6[%c0_12, %c0_13], %16 {strides = array<i32>} : memref<8x128xf32, #tpu.memory_space<vmem>>, vector<8x128xf32>,
    return
  }
  func.func @transform_0(%arg0: i32) -> (i32, i32) {
    %c0_i32 = arith.constant 0 : i32
    %c0_i32_0 = arith.constant 0 : i32
    return %arg0, %c0_i32 : i32, i32
  }
  func.func @transform_1(%arg0: i32) -> (i32, i32) {
    %c0_i32 = arith.constant 0 : i32
    %c0_i32_0 = arith.constant 0 : i32
    %c0_i32_1 = arith.constant 0 : i32
    return %c0_i32, %c0_i32_0 : i32, i32
  }
  func.func @transform_2(%arg0: i32) -> (i32, i32) {
    %c0_i32 = arith.constant 0 : i32
    %c0_i32_0 = arith.constant 0 : i32
    %c0_i32_1 = arith.constant 0 : i32
    return %c0_i32, %c0_i32_0 : i32, i32
  }
  func.func @transform_3(%arg0: i32) -> (i32, i32) {
    %c0_i32 = arith.constant 0 : i32
    %c0_i32_0 = arith.constant 0 : i32
    %c0_i32_1 = arith.constant 0 : i32
    return %c0_i32, %c0_i32_0 : i32, i32
  }
  func.func @transform_4(%arg0: i32) -> (i32, i32) {
    %c0_i32 = arith.constant 0 : i32
    %c0_i32_0 = arith.constant 0 : i32
    %c0_i32_1 = arith.constant 0 : i32
    return %c0_i32, %c0_i32_0 : i32, i32
  }
  func.func @transform_5(%arg0: i32) -> (i32, i32) {
    %c0_i32 = arith.constant 0 : i32
    %c0_i32_0 = arith.constant 0 : i32
    return %arg0, %c0_i32 : i32, i32
  }
}

</mosaic_0001>

<llo_original>
// kernel: net_forward.1
$region0: #{net_forward.1}
  #allocation0 [shape = 'u32[]', space=smem, size = 0x4, offset = 0x4, fixed_abs, tag = 'smem constant byte address 0x4 - core index']
  #allocation1 [shape = 'u32[144,128]{1,0:T(1,128)}', space=vmem, size = 0x12000, scoped, tag = 'internal scratch']
  %s0 = inlined_call_operand.hbm [shape: f32[8,1296], index: 0, kind: input, shape index: {}]
  %s1 = inlined_call_operand.hbm [shape: bf16[1296,256], index: 1, kind: input, shape index: {}]
  %s2 = inlined_call_operand.vmem [shape: f32[1,256], index: 2, kind: input, shape index: {}]
  %s3 = inlined_call_operand.hbm [shape: bf16[256,128], index: 3, kind: input, shape index: {}]
  %s4 = inlined_call_operand.vmem [shape: f32[1,128], index: 4, kind: input, shape index: {}]
  %s5 = inlined_call_operand.hbm [shape: f32[8,128], index: 5, kind: output, shape index: {}]
  %s6 = sld [smem:[#allocation0]]
  $region42: #{net_forward.1} parent=0
    _
  %s8 = ssub.s32 1, %s6
  %s9 = scalar_select 0, %s8, %s6
  $region1: #{net_forward.1} parent=0
    #allocation2 [shape = 'u8[45056]{0}', space=vmem, size = 0xb000, scoped, tag = 'input window, operand 0, single buffered']
    #allocation3 [shape = 's32[1]{0}', space=sflag, size = 0x4, scoped, tag = 'scoped memory for net_forward.1']
    #allocation4 [shape = 's32[1]{0}', space=sflag, size = 0x4, scoped, tag = 'scoped memory for net_forward.1']
    #allocation5 [shape = 'u8[663552]{0}', space=vmem, size = 0xa2000, scoped, tag = 'input window, operand 1, single buffered']
    #allocation6 [shape = 's32[1]{0}', space=sflag, size = 0x4, scoped, tag = 'scoped memory for net_forward.1']
    #allocation7 [shape = 'u8[65536]{0}', space=vmem, size = 0x10000, scoped, tag = 'input window, operand 3, single buffered']
    #allocation8 [shape = 'u8[4096]{0}', space=vmem, size = 0x1000, scoped, tag = 'output window, operand 0, single buffered']
    %10 = vsyncpa [#allocation3], 0
    %11 = vsyncpa [#allocation6], 0
    %12 = vsyncpa [#allocation4], 0
    // Predicated region
    $region2: #{net_forward.1} parent=1 // pred_check
      _
    $region3: #{net_forward.1} parent=1 // pred_check_branch
      %14 = sbr.rel (0) target = $region5
    $region4: #{net_forward.1} parent=1 // pred_region
      %s16 = ssub.s32 1408, 1408
      %17 = vsyncadd [#allocation3], %s16
      %s19 = sshll.u32 [#allocation2], 4
      %s20 = int_to_ptr.vmem [resolvable:$true] %s19
      %22 = dma.hbm_to_vmem [thread:$0]  %s0, 1408, %s20, [#allocation3]
    $region5: #{net_forward.1} parent=1 // pred_fallthru
      _
    // Predicated region
    $region6: #{net_forward.1} parent=1 // pred_check
      _
    $region7: #{net_forward.1} parent=1 // pred_check_branch
      %24 = sbr.rel (0) target = $region9
    $region8: #{net_forward.1} parent=1 // pred_region
      %s26 = ssub.s32 20736, 20736
      %27 = vsyncadd [#allocation6], %s26
      %s28 = sshll.u32 [#allocation5], 4
      %s29 = int_to_ptr.vmem [resolvable:$true] %s28
      %34 = dma.hbm_to_vmem [thread:$0]  %s1, 20736, %s29, [#allocation6], 128, 128, 8
    $region9: #{net_forward.1} parent=1 // pred_fallthru
      _
    // Predicated region
    $region10: #{net_forward.1} parent=1 // pred_check
      _
    $region11: #{net_forward.1} parent=1 // pred_check_branch
      %36 = sbr.rel (0) target = $region13
    $region12: #{net_forward.1} parent=1 // pred_region
      _
    $region13: #{net_forward.1} parent=1 // pred_fallthru
      _
    // Predicated region
    $region14: #{net_forward.1} parent=1 // pred_check
      _
    $region15: #{net_forward.1} parent=1 // pred_check_branch
      %38 = sbr.rel (0) target = $region17
    $region16: #{net_forward.1} parent=1 // pred_region
      %s40 = ssub.s32 2048, 2048
      %41 = vsyncadd [#allocation6], %s40
      %s42 = sshll.u32 [#allocation7], 4
      %s43 = int_to_ptr.vmem [resolvable:$true] %s42
      %48 = dma.hbm_to_vmem [thread:$0]  %s3, 2048, %s43, [#allocation6], 64, 64, 4
    $region17: #{net_forward.1} parent=1 // pred_fallthru
      _
    // Predicated region
    $region18: #{net_forward.1} parent=1 // pred_check
      _
    $region19: #{net_forward.1} parent=1 // pred_check_branch
      %50 = sbr.rel (0) target = $region21
    $region20: #{net_forward.1} parent=1 // pred_region
      _
    $region21: #{net_forward.1} parent=1 // pred_fallthru
      _
    // Predicated region
    $region22: #{net_forward.1} parent=1 // pred_check
      _
    $region23: #{net_forward.1} parent=1 // pred_check_branch
      %52 = sbr.rel (0) target = $region25
    $region24: #{net_forward.1} parent=1 // pred_region
      %53 = dma.done [#allocation3], 1408
    $region25: #{net_forward.1} parent=1 // pred_fallthru
      _
    // Predicated region
    $region26: #{net_forward.1} parent=1 // pred_check
      _
    $region27: #{net_forward.1} parent=1 // pred_check_branch
      %55 = sbr.rel (0) target = $region29
    $region28: #{net_forward.1} parent=1 // pred_region
      %56 = dma.done [#allocation6], 20736
    $region29: #{net_forward.1} parent=1 // pred_fallthru
      _
    // Predicated region
    $region30: #{net_forward.1} parent=1 // pred_check
      _
    $region31: #{net_forward.1} parent=1 // pred_check_branch
      %58 = sbr.rel (0) target = $region33
    $region32: #{net_forward.1} parent=1 // pred_region
      %59 = dma.done [#allocation6], 2048
    $region33: #{net_forward.1} parent=1 // pred_fallthru
      _
    %v61 = vld [vmem:[#allocation2] sm:$0xff]
    %v62 = vld [vmem:[#allocation2 + $0x8] sm:$0xff]
    %v63 = vld [vmem:[#allocation2 + $0x10] sm:$0xff]
    %v64 = vld [vmem:[#allocation2 + $0x18] sm:$0xff]
    %v65 = vld [vmem:[#allocation2 + $0x20] sm:$0xff]
    %v66 = vld [vmem:[#allocation2 + $0x28] sm:$0xff]
    %v67 = vld [vmem:[#allocation2 + $0x30] sm:$0xff]
    %v68 = vld [vmem:[#allocation2 + $0x38] sm:$0xff]
    %v69 = vld [vmem:[#allocation2 + $0x40] sm:$0xff]
    %v70 = vld [vmem:[#allocation2 + $0x48] sm:$0xff]
    %v71 = vld [vmem:[#allocation2 + $0x50] sm:$0xff]
    %v72 = vpack.c.bf16 %v61, %v61
    %v73 = vpack.c.bf16 %v62, %v62
    %v74 = vpack.c.bf16 %v63, %v63
    %v75 = vpack.c.bf16 %v64, %v64
    %v76 = vpack.c.bf16 %v65, %v65
    %v77 = vpack.c.bf16 %v66, %v66
    %v78 = vpack.c.bf16 %v67, %v67
    %v79 = vpack.c.bf16 %v68, %v68
    %v80 = vpack.c.bf16 %v69, %v69
    %v81 = vpack.c.bf16 %v70, %v70
    %v82 = vpack.c.bf16 %v71, %v71
    %v83 = vld [vmem:[#allocation5] sm:$0xff]
    %v84 = vld [vmem:[#allocation5 + $0x8] sm:$0xff]
    %v85 = vld [vmem:[#allocation5 + $0x10] sm:$0xff]
    %v86 = vld [vmem:[#allocation5 + $0x18] sm:$0xff]
    %v87 = vld [vmem:[#allocation5 + $0x20] sm:$0xff]
    %v88 = vld [vmem:[#allocation5 + $0x28] sm:$0xff]
    %v89 = vld [vmem:[#allocation5 + $0x30] sm:$0xff]
    %v90 = vld [vmem:[#allocation5 + $0x38] sm:$0xff]
    %v91 = vld [vmem:[#allocation5 + $0x40] sm:$0xff]
    %v92 = vld [vmem:[#allocation5 + $0x48] sm:$0xff]
    %v93 = vld [vmem:[#allocation5 + $0x50] sm:$0xff]
    %v94 = vld [vmem:[#allocation5 + $0x58] sm:$0xff]
    %v95 = vld [vmem:[#allocation5 + $0x60] sm:$0xff]
    %v96 = vld [vmem:[#allocation5 + $0x68] sm:$0xff]
    %v97 = vld [vmem:[#allocation5 + $0x70] sm:$0xff]
    %v98 = vld [vmem:[#allocation5 + $0x78] sm:$0xff]
    %v99 = vld [vmem:[#allocation5 + $0x80] sm:$0xff]
    %v100 = vld [vmem:[#allocation5 + $0x88] sm:$0xff]
    %v101 = vld [vmem:[#allocation5 + $0x90] sm:$0xff]
    %v102 = vld [vmem:[#allocation5 + $0x98] sm:$0xff]
    %v103 = vld [vmem:[#allocation5 + $0xa0] sm:$0xff]
    %v104 = vld [vmem:[#allocation5 + $0xa8] sm:$0xff]
    %v105 = vld [vmem:[#allocation5 + $0xb0] sm:$0xff]
    %v106 = vld [vmem:[#allocation5 + $0xb8] sm:$0xff]
    %v107 = vld [vmem:[#allocation5 + $0xc0] sm:$0xff]
    %v108 = vld [vmem:[#allocation5 + $0xc8] sm:$0xff]
    %v109 = vld [vmem:[#allocation5 + $0xd0] sm:$0xff]
    %v110 = vld [vmem:[#allocation5 + $0xd8] sm:$0xff]
    %v111 = vld [vmem:[#allocation5 + $0xe0] sm:$0xff]
    %v112 = vld [vmem:[#allocation5 + $0xe8] sm:$0xff]
    %v113 = vld [vmem:[#allocation5 + $0xf0] sm:$0xff]
    %v114 = vld [vmem:[#allocation5 + $0xf8] sm:$0xff]
    %v115 = vld [vmem:[#allocation5 + $0x100] sm:$0xff]
    %v116 = vld [vmem:[#allocation5 + $0x108] sm:$0xff]
    %v117 = vld [vmem:[#allocation5 + $0x110] sm:$0xff]
    %v118 = vld [vmem:[#allocation5 + $0x118] sm:$0xff]
    %v119 = vld [vmem:[#allocation5 + $0x120] sm:$0xff]
    %v120 = vld [vmem:[#allocation5 + $0x128] sm:$0xff]
    %v121 = vld [vmem:[#allocation5 + $0x130] sm:$0xff]
    %v122 = vld [vmem:[#allocation5 + $0x138] sm:$0xff]
    %v123 = vld [vmem:[#allocation5 + $0x140] sm:$0xff]
    %v124 = vld [vmem:[#allocation5 + $0x148] sm:$0xff]
    %v125 = vld [vmem:[#allocation5 + $0x150] sm:$0xff]
    %v126 = vld [vmem:[#allocation5 + $0x158] sm:$0xff]
    %v127 = vld [vmem:[#allocation5 + $0x160] sm:$0xff]
    %v128 = vld [vmem:[#allocation5 + $0x168] sm:$0xff]
    %v129 = vld [vmem:[#allocation5 + $0x170] sm:$0xff]
    %v130 = vld [vmem:[#allocation5 + $0x178] sm:$0xff]
    %v131 = vld [vmem:[#allocation5 + $0x180] sm:$0xff]
    %v132 = vld [vmem:[#allocation5 + $0x188] sm:$0xff]
    %v133 = vld [vmem:[#allocation5 + $0x190] sm:$0xff]
    %v134 = vld [vmem:[#allocation5 + $0x198] sm:$0xff]
    %v135 = vld [vmem:[#allocation5 + $0x1a0] sm:$0xff]
    %v136 = vld [vmem:[#allocation5 + $0x1a8] sm:$0xff]
    %v137 = vld [vmem:[#allocation5 + $0x1b0] sm:$0xff]
    %v138 = vld [vmem:[#allocation5 + $0x1b8] sm:$0xff]
    %v139 = vld [vmem:[#allocation5 + $0x1c0] sm:$0xff]
    %v140 = vld [vmem:[#allocation5 + $0x1c8] sm:$0xff]
    %v141 = vld [vmem:[#allocation5 + $0x1d0] sm:$0xff]
    %v142 = vld [vmem:[#allocation5 + $0x1d8] sm:$0xff]
    %v143 = vld [vmem:[#allocation5 + $0x1e0] sm:$0xff]
    %v144 = vld [vmem:[#allocation5 + $0x1e8] sm:$0xff]
    %v145 = vld [vmem:[#allocation5 + $0x1f0] sm:$0xff]
    %v146 = vld [vmem:[#allocation5 + $0x1f8] sm:$0xff]
    %v147 = vld [vmem:[#allocation5 + $0x200] sm:$0xff]
    %v148 = vld [vmem:[#allocation5 + $0x208] sm:$0xff]
    %v149 = vld [vmem:[#allocation5 + $0x210] sm:$0xff]
    %v150 = vld [vmem:[#allocation5 + $0x218] sm:$0xff]
    %v151 = vld [vmem:[#allocation5 + $0x220] sm:$0xff]
    %v152 = vld [vmem:[#allocation5 + $0x228] sm:$0xff]
    %v153 = vld [vmem:[#allocation5 + $0x230] sm:$0xff]
    %v154 = vld [vmem:[#allocation5 + $0x238] sm:$0xff]
    %v155 = vld [vmem:[#allocation5 + $0x240] sm:$0xff]
    %v156 = vld [vmem:[#allocation5 + $0x248] sm:$0xff]
    %v157 = vld [vmem:[#allocation5 + $0x250] sm:$0xff]
    %v158 = vld [vmem:[#allocation5 + $0x258] sm:$0xff]
    %v159 = vld [vmem:[#allocation5 + $0x260] sm:$0xff]
    %v160 = vld [vmem:[#allocation5 + $0x268] sm:$0xff]
    %v161 = vld [vmem:[#allocation5 + $0x270] sm:$0xff]
    %v162 = vld [vmem:[#allocation5 + $0x278] sm:$0xff]
    %v163 = vld [vmem:[#allocation5 + $0x280] sm:$0xff]
    %v164 = vld [vmem:[#allocation5 + $0x288] sm:$0xff]
    %v165 = vld [vmem:[#allocation5 + $0x290] sm:$0xff]
    %v166 = vld [vmem:[#allocation5 + $0x298] sm:$0xff]
    %v167 = vld [vmem:[#allocation5 + $0x2a0] sm:$0xff]
    %v168 = vld [vmem:[#allocation5 + $0x2a8] sm:$0xff]
    %v169 = vld [vmem:[#allocation5 + $0x2b0] sm:$0xff]
    %v170 = vld [vmem:[#allocation5 + $0x2b8] sm:$0xff]
    %v171 = vld [vmem:[#allocation5 + $0x2c0] sm:$0xff]
    %v172 = vld [vmem:[#allocation5 + $0x2c8] sm:$0xff]
    %v173 = vld [vmem:[#allocation5 + $0x2d0] sm:$0xff]
    %v174 = vld [vmem:[#allocation5 + $0x2d8] sm:$0xff]
    %v175 = vld [vmem:[#allocation5 + $0x2e0] sm:$0xff]
    %v176 = vld [vmem:[#allocation5 + $0x2e8] sm:$0xff]
    %v177 = vld [vmem:[#allocation5 + $0x2f0] sm:$0xff]
    %v178 = vld [vmem:[#allocation5 + $0x2f8] sm:$0xff]
    %v179 = vld [vmem:[#allocation5 + $0x300] sm:$0xff]
    %v180 = vld [vmem:[#allocation5 + $0x308] sm:$0xff]
    %v181 = vld [vmem:[#allocation5 + $0x310] sm:$0xff]
    %v182 = vld [vmem:[#allocation5 + $0x318] sm:$0xff]
    %v183 = vld [vmem:[#allocation5 + $0x320] sm:$0xff]
    %v184 = vld [vmem:[#allocation5 + $0x328] sm:$0xff]
    %v185 = vld [vmem:[#allocation5 + $0x330] sm:$0xff]
    %v186 = vld [vmem:[#allocation5 + $0x338] sm:$0xff]
    %v187 = vld [vmem:[#allocation5 + $0x340] sm:$0xff]
    %v188 = vld [vmem:[#allocation5 + $0x348] sm:$0xff]
    %v189 = vld [vmem:[#allocation5 + $0x350] sm:$0xff]
    %v190 = vld [vmem:[#allocation5 + $0x358] sm:$0xff]
    %v191 = vld [vmem:[#allocation5 + $0x360] sm:$0xff]
    %v192 = vld [vmem:[#allocation5 + $0x368] sm:$0xff]
    %v193 = vld [vmem:[#allocation5 + $0x370] sm:$0xff]
    %v194 = vld [vmem:[#allocation5 + $0x378] sm:$0xff]
    %v195 = vld [vmem:[#allocation5 + $0x380] sm:$0xff]
    %v196 = vld [vmem:[#allocation5 + $0x388] sm:$0xff]
    %v197 = vld [vmem:[#allocation5 + $0x390] sm:$0xff]
    %v198 = vld [vmem:[#allocation5 + $0x398] sm:$0xff]
    %v199 = vld [vmem:[#allocation5 + $0x3a0] sm:$0xff]
    %v200 = vld [vmem:[#allocation5 + $0x3a8] sm:$0xff]
    %v201 = vld [vmem:[#allocation5 + $0x3b0] sm:$0xff]
    %v202 = vld [vmem:[#allocation5 + $0x3b8] sm:$0xff]
    %v203 = vld [vmem:[#allocation5 + $0x3c0] sm:$0xff]
    %v204 = vld [vmem:[#allocation5 + $0x3c8] sm:$0xff]
    %v205 = vld [vmem:[#allocation5 + $0x3d0] sm:$0xff]
    %v206 = vld [vmem:[#allocation5 + $0x3d8] sm:$0xff]
    %v207 = vld [vmem:[#allocation5 + $0x3e0] sm:$0xff]
    %v208 = vld [vmem:[#allocation5 + $0x3e8] sm:$0xff]
    %v209 = vld [vmem:[#allocation5 + $0x3f0] sm:$0xff]
    %v210 = vld [vmem:[#allocation5 + $0x3f8] sm:$0xff]
    %v211 = vld [vmem:[#allocation5 + $0x400] sm:$0xff]
    %v212 = vld [vmem:[#allocation5 + $0x408] sm:$0xff]
    %v213 = vld [vmem:[#allocation5 + $0x410] sm:$0xff]
    %v214 = vld [vmem:[#allocation5 + $0x418] sm:$0xff]
    %v215 = vld [vmem:[#allocation5 + $0x420] sm:$0xff]
    %v216 = vld [vmem:[#allocation5 + $0x428] sm:$0xff]
    %v217 = vld [vmem:[#allocation5 + $0x430] sm:$0xff]
    %v218 = vld [vmem:[#allocation5 + $0x438] sm:$0xff]
    %v219 = vld [vmem:[#allocation5 + $0x440] sm:$0xff]
    %v220 = vld [vmem:[#allocation5 + $0x448] sm:$0xff]
    %v221 = vld [vmem:[#allocation5 + $0x450] sm:$0xff]
    %v222 = vld [vmem:[#allocation5 + $0x458] sm:$0xff]
    %v223 = vld [vmem:[#allocation5 + $0x460] sm:$0xff]
    %v224 = vld [vmem:[#allocation5 + $0x468] sm:$0xff]
    %v225 = vld [vmem:[#allocation5 + $0x470] sm:$0xff]
    %v226 = vld [vmem:[#allocation5 + $0x478] sm:$0xff]
    %v227 = vld [vmem:[#allocation5 + $0x480] sm:$0xff]
    %v228 = vld [vmem:[#allocation5 + $0x488] sm:$0xff]
    %v229 = vld [vmem:[#allocation5 + $0x490] sm:$0xff]
    %v230 = vld [vmem:[#allocation5 + $0x498] sm:$0xff]
    %v231 = vld [vmem:[#allocation5 + $0x4a0] sm:$0xff]
    %v232 = vld [vmem:[#allocation5 + $0x4a8] sm:$0xff]
    %v233 = vld [vmem:[#allocation5 + $0x4b0] sm:$0xff]
    %v234 = vld [vmem:[#allocation5 + $0x4b8] sm:$0xff]
    %v235 = vld [vmem:[#allocation5 + $0x4c0] sm:$0xff]
    %v236 = vld [vmem:[#allocation5 + $0x4c8] sm:$0xff]
    %v237 = vld [vmem:[#allocation5 + $0x4d0] sm:$0xff]
    %v238 = vld [vmem:[#allocation5 + $0x4d8] sm:$0xff]
    %v239 = vld [vmem:[#allocation5 + $0x4e0] sm:$0xff]
    %v240 = vld [vmem:[#allocation5 + $0x4e8] sm:$0xff]
    %v241 = vld [vmem:[#allocation5 + $0x4f0] sm:$0xff]
    %v242 = vld [vmem:[#allocation5 + $0x4f8] sm:$0xff]
    %v243 = vld [vmem:[#allocation5 + $0x500] sm:$0xff]
    %v244 = vld [vmem:[#allocation5 + $0x508] sm:$0xff]
    %v245 = vld [vmem:[%s2] sm:$0x3]
    %v247 = vlaneseq
    %v248 = vshrl.u32 %v247, 7
    %v249 = vsub.s32 0, %v248
    %v250 = vrot.slane %v245, %v249
    %v251 = vlaneseq
    %v252 = vshrl.u32 %v251, 7
    %v253 = vsub.s32 1, %v252
    %v254 = vrot.slane %v245, %v253
    %v419 = vunpack.c.l.b16 %v83
    %v420 = vunpack.c.h.b16 %v83
    %v421 = vunpack.c.l.b16 %v84
    %v422 = vunpack.c.h.b16 %v84
    %v423 = vunpack.c.l.b16 %v85
    %v424 = vunpack.c.h.b16 %v85
    %v425 = vunpack.c.l.b16 %v86
    %v426 = vunpack.c.h.b16 %v86
    %v427 = vunpack.c.l.b16 %v87
    %v428 = vunpack.c.h.b16 %v87
    %v429 = vunpack.c.l.b16 %v88
    %v430 = vunpack.c.h.b16 %v88
    %v431 = vunpack.c.l.b16 %v89
    %v432 = vunpack.c.h.b16 %v89
    %v433 = vunpack.c.l.b16 %v90
    %v434 = vunpack.c.h.b16 %v90
    %v435 = vunpack.c.l.b16 %v91
    %v436 = vunpack.c.h.b16 %v91
    %v437 = vunpack.c.l.b16 %v92
    %v438 = vunpack.c.h.b16 %v92
    %v439 = vunpack.c.l.b16 %v93
    %v440 = vunpack.c.h.b16 %v93
    %v441 = vunpack.c.l.b16 %v94
    %v442 = vunpack.c.h.b16 %v94
    %v443 = vunpack.c.l.b16 %v95
    %v444 = vunpack.c.h.b16 %v95
    %v445 = vunpack.c.l.b16 %v96
    %v446 = vunpack.c.h.b16 %v96
    %v447 = vunpack.c.l.b16 %v97
    %v448 = vunpack.c.h.b16 %v97
    %v449 = vunpack.c.l.b16 %v98
    %v450 = vunpack.c.h.b16 %v98
    %v451 = vunpack.c.l.b16 %v99
    %v452 = vunpack.c.h.b16 %v99
    %v453 = vunpack.c.l.b16 %v100
    %v454 = vunpack.c.h.b16 %v100
    %v455 = vunpack.c.l.b16 %v101
    %v456 = vunpack.c.h.b16 %v101
    %v457 = vunpack.c.l.b16 %v102
    %v458 = vunpack.c.h.b16 %v102
    %v459 = vunpack.c.l.b16 %v103
    %v460 = vunpack.c.h.b16 %v103
    %v461 = vunpack.c.l.b16 %v104
    %v462 = vunpack.c.h.b16 %v104
    %v463 = vunpack.c.l.b16 %v105
    %v464 = vunpack.c.h.b16 %v105
    %v465 = vunpack.c.l.b16 %v106
    %v466 = vunpack.c.h.b16 %v106
    %v467 = vunpack.c.l.b16 %v107
    %v468 = vunpack.c.h.b16 %v107
    %v469 = vunpack.c.l.b16 %v108
    %v470 = vunpack.c.h.b16 %v108
    %v471 = vunpack.c.l.b16 %v109
    %v472 = vunpack.c.h.b16 %v109
    %v473 = vunpack.c.l.b16 %v110
    %v474 = vunpack.c.h.b16 %v110
    %v475 = vunpack.c.l.b16 %v111
    %v476 = vunpack.c.h.b16 %v111
    %v477 = vunpack.c.l.b16 %v112
    %v478 = vunpack.c.h.b16 %v112
    %v479 = vunpack.c.l.b16 %v113
    %v480 = vunpack.c.h.b16 %v113
    %v481 = vunpack.c.l.b16 %v114
    %v482 = vunpack.c.h.b16 %v114
    %v483 = vunpack.c.l.b16 %v115
    %v484 = vunpack.c.h.b16 %v115
    %v485 = vunpack.c.l.b16 %v116
    %v486 = vunpack.c.h.b16 %v116
    %v487 = vunpack.c.l.b16 %v117
    %v488 = vunpack.c.h.b16 %v117
    %v489 = vunpack.c.l.b16 %v118
    %v490 = vunpack.c.h.b16 %v118
    %v491 = vunpack.c.l.b16 %v119
    %v492 = vunpack.c.h.b16 %v119
    %v493 = vunpack.c.l.b16 %v120
    %v494 = vunpack.c.h.b16 %v120
    %v495 = vunpack.c.l.b16 %v121
    %v496 = vunpack.c.h.b16 %v121
    %v497 = vunpack.c.l.b16 %v122
    %v498 = vunpack.c.h.b16 %v122
    %v499 = vunpack.c.l.b16 %v123
    %v500 = vunpack.c.h.b16 %v123
    %v501 = vunpack.c.l.b16 %v124
    %v502 = vunpack.c.h.b16 %v124
    %v503 = vunpack.c.l.b16 %v125
    %v504 = vunpack.c.h.b16 %v125
    %v505 = vunpack.c.l.b16 %v126
    %v506 = vunpack.c.h.b16 %v126
    %v507 = vunpack.c.l.b16 %v127
    %v508 = vunpack.c.h.b16 %v127
    %v509 = vunpack.c.l.b16 %v128
    %v510 = vunpack.c.h.b16 %v128
    %v511 = vunpack.c.l.b16 %v129
    %v512 = vunpack.c.h.b16 %v129
    %v513 = vunpack.c.l.b16 %v130
    %v514 = vunpack.c.h.b16 %v130
    %v515 = vunpack.c.l.b16 %v131
    %v516 = vunpack.c.h.b16 %v131
    %v517 = vunpack.c.l.b16 %v132
    %v518 = vunpack.c.h.b16 %v132
    %v519 = vunpack.c.l.b16 %v133
    %v520 = vunpack.c.h.b16 %v133
    %v521 = vunpack.c.l.b16 %v134
    %v522 = vunpack.c.h.b16 %v134
    %v523 = vunpack.c.l.b16 %v135
    %v524 = vunpack.c.h.b16 %v135
    %v525 = vunpack.c.l.b16 %v136
    %v526 = vunpack.c.h.b16 %v136
    %v527 = vunpack.c.l.b16 %v137
    %v528 = vunpack.c.h.b16 %v137
    %v529 = vunpack.c.l.b16 %v138
    %v530 = vunpack.c.h.b16 %v138
    %v531 = vunpack.c.l.b16 %v139
    %v532 = vunpack.c.h.b16 %v139
    %v533 = vunpack.c.l.b16 %v140
    %v534 = vunpack.c.h.b16 %v140
    %v535 = vunpack.c.l.b16 %v141
    %v536 = vunpack.c.h.b16 %v141
    %v537 = vunpack.c.l.b16 %v142
    %v538 = vunpack.c.h.b16 %v142
    %v539 = vunpack.c.l.b16 %v143
    %v540 = vunpack.c.h.b16 %v143
    %v541 = vunpack.c.l.b16 %v144
    %v542 = vunpack.c.h.b16 %v144
    %v543 = vunpack.c.l.b16 %v145
    %v544 = vunpack.c.h.b16 %v145
    %v545 = vunpack.c.l.b16 %v146
    %v546 = vunpack.c.h.b16 %v146
    %v547 = vunpack.c.l.b16 %v147
    %v548 = vunpack.c.h.b16 %v147
    %v549 = vunpack.c.l.b16 %v148
    %v550 = vunpack.c.h.b16 %v148
    %v551 = vunpack.c.l.b16 %v149
    %v552 = vunpack.c.h.b16 %v149
    %v553 = vunpack.c.l.b16 %v150
    %v554 = vunpack.c.h.b16 %v150
    %v555 = vunpack.c.l.b16 %v151
    %v556 = vunpack.c.h.b16 %v151
    %v557 = vunpack.c.l.b16 %v152
    %v558 = vunpack.c.h.b16 %v152
    %v559 = vunpack.c.l.b16 %v153
    %v560 = vunpack.c.h.b16 %v153
    %v561 = vunpack.c.l.b16 %v154
    %v562 = vunpack.c.h.b16 %v154
    %v563 = vunpack.c.l.b16 %v155
    %v564 = vunpack.c.h.b16 %v155
    %v565 = vunpack.c.l.b16 %v156
    %v566 = vunpack.c.h.b16 %v156
    %v567 = vunpack.c.l.b16 %v157
    %v568 = vunpack.c.h.b16 %v157
    %v569 = vunpack.c.l.b16 %v158
    %v570 = vunpack.c.h.b16 %v158
    %v571 = vunpack.c.l.b16 %v159
    %v572 = vunpack.c.h.b16 %v159
    %v573 = vunpack.c.l.b16 %v160
    %v574 = vunpack.c.h.b16 %v160
    %v575 = vunpack.c.l.b16 %v161
    %v576 = vunpack.c.h.b16 %v161
    %v577 = vunpack.c.l.b16 %v162
    %v578 = vunpack.c.h.b16 %v162
    %v579 = vunpack.c.l.b16 %v163
    %v580 = vunpack.c.h.b16 %v163
    %v581 = vunpack.c.l.b16 %v164
    %v582 = vunpack.c.h.b16 %v164
    %v583 = vunpack.c.l.b16 %v165
    %v584 = vunpack.c.h.b16 %v165
    %v585 = vunpack.c.l.b16 %v166
    %v586 = vunpack.c.h.b16 %v166
    %v587 = vunpack.c.l.b16 %v167
    %v588 = vunpack.c.h.b16 %v167
    %v589 = vunpack.c.l.b16 %v168
    %v590 = vunpack.c.h.b16 %v168
    %v591 = vunpack.c.l.b16 %v169
    %v592 = vunpack.c.h.b16 %v169
    %v593 = vunpack.c.l.b16 %v170
    %v594 = vunpack.c.h.b16 %v170
    %v595 = vunpack.c.l.b16 %v171
    %v596 = vunpack.c.h.b16 %v171
    %v597 = vunpack.c.l.b16 %v172
    %v598 = vunpack.c.h.b16 %v172
    %v599 = vunpack.c.l.b16 %v173
    %v600 = vunpack.c.h.b16 %v173
    %v601 = vunpack.c.l.b16 %v174
    %v602 = vunpack.c.h.b16 %v174
    %v603 = vunpack.c.l.b16 %v175
    %v604 = vunpack.c.h.b16 %v175
    %v605 = vunpack.c.l.b16 %v176
    %v606 = vunpack.c.h.b16 %v176
    %v607 = vunpack.c.l.b16 %v177
    %v608 = vunpack.c.h.b16 %v177
    %v609 = vunpack.c.l.b16 %v178
    %v610 = vunpack.c.h.b16 %v178
    %v611 = vunpack.c.l.b16 %v179
    %v612 = vunpack.c.h.b16 %v179
    %v613 = vunpack.c.l.b16 %v180
    %v614 = vunpack.c.h.b16 %v180
    %v615 = vunpack.c.l.b16 %v181
    %v616 = vunpack.c.h.b16 %v181
    %v617 = vunpack.c.l.b16 %v182
    %v618 = vunpack.c.h.b16 %v182
    %v619 = vunpack.c.l.b16 %v183
    %v620 = vunpack.c.h.b16 %v183
    %v621 = vunpack.c.l.b16 %v184
    %v622 = vunpack.c.h.b16 %v184
    %v623 = vunpack.c.l.b16 %v185
    %v624 = vunpack.c.h.b16 %v185
    %v625 = vunpack.c.l.b16 %v186
    %v626 = vunpack.c.h.b16 %v186
    %v627 = vunpack.c.l.b16 %v187
    %v628 = vunpack.c.h.b16 %v187
    %v629 = vunpack.c.l.b16 %v188
    %v630 = vunpack.c.h.b16 %v188
    %v631 = vunpack.c.l.b16 %v189
    %v632 = vunpack.c.h.b16 %v189
    %v633 = vunpack.c.l.b16 %v190
    %v634 = vunpack.c.h.b16 %v190
    %v635 = vunpack.c.l.b16 %v191
    %v636 = vunpack.c.h.b16 %v191
    %v637 = vunpack.c.l.b16 %v192
    %v638 = vunpack.c.h.b16 %v192
    %v639 = vunpack.c.l.b16 %v193
    %v640 = vunpack.c.h.b16 %v193
    %v641 = vunpack.c.l.b16 %v194
    %v642 = vunpack.c.h.b16 %v194
    %v643 = vunpack.c.l.b16 %v195
    %v644 = vunpack.c.h.b16 %v195
    %v645 = vunpack.c.l.b16 %v196
    %v646 = vunpack.c.h.b16 %v196
    %v647 = vunpack.c.l.b16 %v197
    %v648 = vunpack.c.h.b16 %v197
    %v649 = vunpack.c.l.b16 %v198
    %v650 = vunpack.c.h.b16 %v198
    %v651 = vunpack.c.l.b16 %v199
    %v652 = vunpack.c.h.b16 %v199
    %v653 = vunpack.c.l.b16 %v200
    %v654 = vunpack.c.h.b16 %v200
    %v655 = vunpack.c.l.b16 %v201
    %v656 = vunpack.c.h.b16 %v201
    %v657 = vunpack.c.l.b16 %v202
    %v658 = vunpack.c.h.b16 %v202
    %v659 = vunpack.c.l.b16 %v203
    %v660 = vunpack.c.h.b16 %v203
    %v661 = vunpack.c.l.b16 %v204
    %v662 = vunpack.c.h.b16 %v204
    %v663 = vunpack.c.l.b16 %v205
    %v664 = vunpack.c.h.b16 %v205
    %v665 = vunpack.c.l.b16 %v206
    %v666 = vunpack.c.h.b16 %v206
    %v667 = vunpack.c.l.b16 %v207
    %v668 = vunpack.c.h.b16 %v207
    %v669 = vunpack.c.l.b16 %v208
    %v670 = vunpack.c.h.b16 %v208
    %v671 = vunpack.c.l.b16 %v209
    %v672 = vunpack.c.h.b16 %v209
    %v673 = vunpack.c.l.b16 %v210
    %v674 = vunpack.c.h.b16 %v210
    %v675 = vunpack.c.l.b16 %v211
    %v676 = vunpack.c.h.b16 %v211
    %v677 = vunpack.c.l.b16 %v212
    %v678 = vunpack.c.h.b16 %v212
    %v679 = vunpack.c.l.b16 %v213
    %v680 = vunpack.c.h.b16 %v213
    %v681 = vunpack.c.l.b16 %v214
    %v682 = vunpack.c.h.b16 %v214
    %v683 = vunpack.c.l.b16 %v215
    %v684 = vunpack.c.h.b16 %v215
    %v685 = vunpack.c.l.b16 %v216
    %v686 = vunpack.c.h.b16 %v216
    %v687 = vunpack.c.l.b16 %v217
    %v688 = vunpack.c.h.b16 %v217
    %v689 = vunpack.c.l.b16 %v218
    %v690 = vunpack.c.h.b16 %v218
    %v691 = vunpack.c.l.b16 %v219
    %v692 = vunpack.c.h.b16 %v219
    %v693 = vunpack.c.l.b16 %v220
    %v694 = vunpack.c.h.b16 %v220
    %v695 = vunpack.c.l.b16 %v221
    %v696 = vunpack.c.h.b16 %v221
    %v697 = vunpack.c.l.b16 %v222
    %v698 = vunpack.c.h.b16 %v222
    %v699 = vunpack.c.l.b16 %v223
    %v700 = vunpack.c.h.b16 %v223
    %v701 = vunpack.c.l.b16 %v224
    %v702 = vunpack.c.h.b16 %v224
    %v703 = vunpack.c.l.b16 %v225
    %v704 = vunpack.c.h.b16 %v225
    %v705 = vunpack.c.l.b16 %v226
    %v706 = vunpack.c.h.b16 %v226
    %v707 = vunpack.c.l.b16 %v227
    %v708 = vunpack.c.h.b16 %v227
    %v709 = vunpack.c.l.b16 %v228
    %v710 = vunpack.c.h.b16 %v228
    %v711 = vunpack.c.l.b16 %v229
    %v712 = vunpack.c.h.b16 %v229
    %v713 = vunpack.c.l.b16 %v230
    %v714 = vunpack.c.h.b16 %v230
    %v715 = vunpack.c.l.b16 %v231
    %v716 = vunpack.c.h.b16 %v231
    %v717 = vunpack.c.l.b16 %v232
    %v718 = vunpack.c.h.b16 %v232
    %v719 = vunpack.c.l.b16 %v233
    %v720 = vunpack.c.h.b16 %v233
    %v721 = vunpack.c.l.b16 %v234
    %v722 = vunpack.c.h.b16 %v234
    %v723 = vunpack.c.l.b16 %v235
    %v724 = vunpack.c.h.b16 %v235
    %v725 = vunpack.c.l.b16 %v236
    %v726 = vunpack.c.h.b16 %v236
    %v727 = vunpack.c.l.b16 %v237
    %v728 = vunpack.c.h.b16 %v237
    %v729 = vunpack.c.l.b16 %v238
    %v730 = vunpack.c.h.b16 %v238
    %v731 = vunpack.c.l.b16 %v239
    %v732 = vunpack.c.h.b16 %v239
    %v733 = vunpack.c.l.b16 %v240
    %v734 = vunpack.c.h.b16 %v240
    %v735 = vunpack.c.l.b16 %v241
    %v736 = vunpack.c.h.b16 %v241
    %v737 = vunpack.c.l.b16 %v242
    %v738 = vunpack.c.h.b16 %v242
    %v739 = vunpack.c.l.b16 %v243
    %v740 = vunpack.c.h.b16 %v243
    %v741 = vunpack.c.l.b16 %v244
    %v742 = vunpack.c.h.b16 %v244
    %v743 = vpack.c.b16 %v421, %v419
    %v744 = vpack.c.b16 %v422, %v420
    %v745 = vpack.c.b16 %v425, %v423
    %v746 = vpack.c.b16 %v426, %v424
    %v747 = vpack.c.b16 %v429, %v427
    %v748 = vpack.c.b16 %v430, %v428
    %v749 = vpack.c.b16 %v433, %v431
    %v750 = vpack.c.b16 %v434, %v432
    %v751 = vpack.c.b16 %v437, %v435
    %v752 = vpack.c.b16 %v438, %v436
    %v753 = vpack.c.b16 %v441, %v439
    %v754 = vpack.c.b16 %v442, %v440
    %v755 = vpack.c.b16 %v445, %v443
    %v756 = vpack.c.b16 %v446, %v444
    %v757 = vpack.c.b16 %v449, %v447
    %v758 = vpack.c.b16 %v450, %v448
    %v759 = vpack.c.b16 %v453, %v451
    %v760 = vpack.c.b16 %v454, %v452
    %v761 = vpack.c.b16 %v457, %v455
    %v762 = vpack.c.b16 %v458, %v456
    %v763 = vpack.c.b16 %v461, %v459
    %v764 = vpack.c.b16 %v462, %v460
    %v765 = vpack.c.b16 %v465, %v463
    %v766 = vpack.c.b16 %v466, %v464
    %v767 = vpack.c.b16 %v469, %v467
    %v768 = vpack.c.b16 %v470, %v468
    %v769 = vpack.c.b16 %v473, %v471
    %v770 = vpack.c.b16 %v474, %v472
    %v771 = vpack.c.b16 %v477, %v475
    %v772 = vpack.c.b16 %v478, %v476
    %v773 = vpack.c.b16 %v481, %v479
    %v774 = vpack.c.b16 %v482, %v480
    %v775 = vpack.c.b16 %v485, %v483
    %v776 = vpack.c.b16 %v486, %v484
    %v777 = vpack.c.b16 %v489, %v487
    %v778 = vpack.c.b16 %v490, %v488
    %v779 = vpack.c.b16 %v493, %v491
    %v780 = vpack.c.b16 %v494, %v492
    %v781 = vpack.c.b16 %v497, %v495
    %v782 = vpack.c.b16 %v498, %v496
    %v783 = vpack.c.b16 %v501, %v499
    %v784 = vpack.c.b16 %v502, %v500
    %v785 = vpack.c.b16 %v505, %v503
    %v786 = vpack.c.b16 %v506, %v504
    %v787 = vpack.c.b16 %v509, %v507
    %v788 = vpack.c.b16 %v510, %v508
    %v789 = vpack.c.b16 %v513, %v511
    %v790 = vpack.c.b16 %v514, %v512
    %v791 = vpack.c.b16 %v517, %v515
    %v792 = vpack.c.b16 %v518, %v516
    %v793 = vpack.c.b16 %v521, %v519
    %v794 = vpack.c.b16 %v522, %v520
    %v795 = vpack.c.b16 %v525, %v523
    %v796 = vpack.c.b16 %v526, %v524
    %v797 = vpack.c.b16 %v529, %v527
    %v798 = vpack.c.b16 %v530, %v528
    %v799 = vpack.c.b16 %v533, %v531
    %v800 = vpack.c.b16 %v534, %v532
    %v801 = vpack.c.b16 %v537, %v535
    %v802 = vpack.c.b16 %v538, %v536
    %v803 = vpack.c.b16 %v541, %v539
    %v804 = vpack.c.b16 %v542, %v540
    %v805 = vpack.c.b16 %v545, %v543
    %v806 = vpack.c.b16 %v546, %v544
    %v807 = vpack.c.b16 %v549, %v547
    %v808 = vpack.c.b16 %v550, %v548
    %v809 = vpack.c.b16 %v553, %v551
    %v810 = vpack.c.b16 %v554, %v552
    %v811 = vpack.c.b16 %v557, %v555
    %v812 = vpack.c.b16 %v558, %v556
    %v813 = vpack.c.b16 %v561, %v559
    %v814 = vpack.c.b16 %v562, %v560
    %v815 = vpack.c.b16 %v565, %v563
    %v816 = vpack.c.b16 %v566, %v564
    %v817 = vpack.c.b16 %v569, %v567
    %v818 = vpack.c.b16 %v570, %v568
    %v819 = vpack.c.b16 %v573, %v571
    %v820 = vpack.c.b16 %v574, %v572
    %v821 = vpack.c.b16 %v577, %v575
    %v822 = vpack.c.b16 %v578, %v576
    %v823 = vpack.c.b16 %v581, %v579
    %v824 = vpack.c.b16 %v582, %v580
    %v825 = vpack.c.b16 %v585, %v583
    %v826 = vpack.c.b16 %v586, %v584
    %v827 = vpack.c.b16 %v589, %v587
    %v828 = vpack.c.b16 %v590, %v588
    %v829 = vpack.c.b16 %v593, %v591
    %v830 = vpack.c.b16 %v594, %v592
    %v831 = vpack.c.b16 %v597, %v595
    %v832 = vpack.c.b16 %v598, %v596
    %v833 = vpack.c.b16 %v601, %v599
    %v834 = vpack.c.b16 %v602, %v600
    %v835 = vpack.c.b16 %v605, %v603
    %v836 = vpack.c.b16 %v606, %v604
    %v837 = vpack.c.b16 %v609, %v607
    %v838 = vpack.c.b16 %v610, %v608
    %v839 = vpack.c.b16 %v613, %v611
    %v840 = vpack.c.b16 %v614, %v612
    %v841 = vpack.c.b16 %v617, %v615
    %v842 = vpack.c.b16 %v618, %v616
    %v843 = vpack.c.b16 %v621, %v619
    %v844 = vpack.c.b16 %v622, %v620
    %v845 = vpack.c.b16 %v625, %v623
    %v846 = vpack.c.b16 %v626, %v624
    %v847 = vpack.c.b16 %v629, %v627
    %v848 = vpack.c.b16 %v630, %v628
    %v849 = vpack.c.b16 %v633, %v631
    %v850 = vpack.c.b16 %v634, %v632
    %v851 = vpack.c.b16 %v637, %v635
    %v852 = vpack.c.b16 %v638, %v636
    %v853 = vpack.c.b16 %v641, %v639
    %v854 = vpack.c.b16 %v642, %v640
    %v855 = vpack.c.b16 %v645, %v643
    %v856 = vpack.c.b16 %v646, %v644
    %v857 = vpack.c.b16 %v649, %v647
    %v858 = vpack.c.b16 %v650, %v648
    %v859 = vpack.c.b16 %v653, %v651
    %v860 = vpack.c.b16 %v654, %v652
    %v861 = vpack.c.b16 %v657, %v655
    %v862 = vpack.c.b16 %v658, %v656
    %v863 = vpack.c.b16 %v661, %v659
    %v864 = vpack.c.b16 %v662, %v660
    %v865 = vpack.c.b16 %v665, %v663
    %v866 = vpack.c.b16 %v666, %v664
    %v867 = vpack.c.b16 %v669, %v667
    %v868 = vpack.c.b16 %v670, %v668
    %v869 = vpack.c.b16 %v673, %v671
    %v870 = vpack.c.b16 %v674, %v672
    %v871 = vpack.c.b16 %v677, %v675
    %v872 = vpack.c.b16 %v678, %v676
    %v873 = vpack.c.b16 %v681, %v679
    %v874 = vpack.c.b16 %v682, %v680
    %v875 = vpack.c.b16 %v685, %v683
    %v876 = vpack.c.b16 %v686, %v684
    %v877 = vpack.c.b16 %v689, %v687
    %v878 = vpack.c.b16 %v690, %v688
    %v879 = vpack.c.b16 %v693, %v691
    %v880 = vpack.c.b16 %v694, %v692
    %v881 = vpack.c.b16 %v697, %v695
    %v882 = vpack.c.b16 %v698, %v696
    %v883 = vpack.c.b16 %v701, %v699
    %v884 = vpack.c.b16 %v702, %v700
    %v885 = vpack.c.b16 %v705, %v703
    %v886 = vpack.c.b16 %v706, %v704
    %v887 = vpack.c.b16 %v709, %v707
    %v888 = vpack.c.b16 %v710, %v708
    %v889 = vpack.c.b16 %v713, %v711
    %v890 = vpack.c.b16 %v714, %v712
    %v891 = vpack.c.b16 %v717, %v715
    %v892 = vpack.c.b16 %v718, %v716
    %v893 = vpack.c.b16 %v721, %v719
    %v894 = vpack.c.b16 %v722, %v720
    %v895 = vpack.c.b16 %v725, %v723
    %v896 = vpack.c.b16 %v726, %v724
    %v897 = vpack.c.b16 %v729, %v727
    %v898 = vpack.c.b16 %v730, %v728
    %v899 = vpack.c.b16 %v733, %v731
    %v900 = vpack.c.b16 %v734, %v732
    %v901 = vpack.c.b16 %v737, %v735
    %v902 = vpack.c.b16 %v738, %v736
    %v903 = vpack.c.b16 %v741, %v739
    %v904 = vpack.c.b16 %v742, %v740
    %vm1067 = vcmask 130048
    %v1069 = vsel %vm1067, %v82, 0
    %1071 = vmatprep.subr.bf16.mxu0 %v758
    %1072 = vmatpush1.bf16.msra.mxu0 %v757
    %1073 = vmatprep.subr.bf16.mxu0 %v756
    %1074 = vmatpush1.bf16.msra.mxu0 %v755
    %1075 = vmatprep.subr.bf16.mxu0 %v754
    %1076 = vmatpush1.bf16.msra.mxu0 %v753
    %1077 = vmatprep.subr.bf16.mxu0 %v752
    %1078 = vmatpush1.bf16.msra.mxu0 %v751
    %1079 = vmatprep.subr.bf16.mxu0 %v750
    %1080 = vmatpush1.bf16.msra.mxu0 %v749
    %1081 = vmatprep.subr.bf16.mxu0 %v748
    %1082 = vmatpush1.bf16.msra.mxu0 %v747
    %1083 = vmatprep.subr.bf16.mxu0 %v746
    %1084 = vmatpush1.bf16.msra.mxu0 %v745
    %1085 = vmatprep.subr.bf16.mxu0 %v744
    %1086 = vmatpush1.bf16.msra.mxu0 %v743
    %1087 = vmatprep.subr.bf16.mxu0 %v774
    %1088 = vmatpush2.bf16.msra.mxu0 %v773
    %1089 = vmatprep.subr.bf16.mxu0 %v772
    %1090 = vmatpush2.bf16.msra.mxu0 %v771
    %1091 = vmatprep.subr.bf16.mxu0 %v770
    %1092 = vmatpush2.bf16.msra.mxu0 %v769
    %1093 = vmatprep.subr.bf16.mxu0 %v768
    %1094 = vmatpush2.bf16.msra.mxu0 %v767
    %1095 = vmatprep.subr.bf16.mxu0 %v766
    %1096 = vmatpush2.bf16.msra.mxu0 %v765
    %1097 = vmatprep.subr.bf16.mxu0 %v764
    %1098 = vmatpush2.bf16.msra.mxu0 %v763
    %1099 = vmatprep.subr.bf16.mxu0 %v762
    %1100 = vmatpush2.bf16.msra.mxu0 %v761
    %1101 = vmatprep.subr.bf16.mxu0 %v760
    %1102 = vmatpush2.bf16.msra.mxu0 %v759
    %1103 = vmatprep.mubr.bf16.mxu0 %v73
    %1104 = vmatmul.mubr.bf16.gmra.mxu0 %v72
    %v1105 = vpop.f32.mrf.mxu0
    %v1106 = vadd.f32 %v250, %v1105
    %v1107 = vpop.f32.mrf.mxu0
    %v1108 = vadd.f32 %v254, %v1107
    %v1109 = vpop.f32.mrf.mxu0
    %v1110 = vpop.f32.mrf.mxu0
    %1111 = vdwg.mxu0
    %1112 = vmatprep.subr.bf16.mxu0 %v790
    %1113 = vmatpush1.bf16.msra.mxu0 %v789
    %1114 = vmatprep.subr.bf16.mxu0 %v788
    %1115 = vmatpush1.bf16.msra.mxu0 %v787
    %1116 = vmatprep.subr.bf16.mxu0 %v786
    %1117 = vmatpush1.bf16.msra.mxu0 %v785
    %1118 = vmatprep.subr.bf16.mxu0 %v784
    %1119 = vmatpush1.bf16.msra.mxu0 %v783
    %1120 = vmatprep.subr.bf16.mxu0 %v782
    %1121 = vmatpush1.bf16.msra.mxu0 %v781
    %1122 = vmatprep.subr.bf16.mxu0 %v780
    %1123 = vmatpush1.bf16.msra.mxu0 %v779
    %1124 = vmatprep.subr.bf16.mxu0 %v778
    %1125 = vmatpush1.bf16.msra.mxu0 %v777
    %1126 = vmatprep.subr.bf16.mxu0 %v776
    %1127 = vmatpush1.bf16.msra.mxu0 %v775
    %1128 = vmatprep.subr.bf16.mxu0 %v806
    %1129 = vmatpush2.bf16.msra.mxu0 %v805
    %1130 = vmatprep.subr.bf16.mxu0 %v804
    %1131 = vmatpush2.bf16.msra.mxu0 %v803
    %1132 = vmatprep.subr.bf16.mxu0 %v802
    %1133 = vmatpush2.bf16.msra.mxu0 %v801
    %1134 = vmatprep.subr.bf16.mxu0 %v800
    %1135 = vmatpush2.bf16.msra.mxu0 %v799
    %1136 = vmatprep.subr.bf16.mxu0 %v798
    %1137 = vmatpush2.bf16.msra.mxu0 %v797
    %1138 = vmatprep.subr.bf16.mxu0 %v796
    %1139 = vmatpush2.bf16.msra.mxu0 %v795
    %1140 = vmatprep.subr.bf16.mxu0 %v794
    %1141 = vmatpush2.bf16.msra.mxu0 %v793
    %1142 = vmatprep.subr.bf16.mxu0 %v792
    %1143 = vmatpush2.bf16.msra.mxu0 %v791
    %1144 = vmatprep.mubr.bf16.mxu0 %v75
    %1145 = vmatmul.mubr.bf16.gmra.mxu0 %v74
    %v1146 = vpop.f32.mrf.mxu0
    %v1147 = vadd.f32 %v1106, %v1146
    %v1148 = vpop.f32.mrf.mxu0
    %v1149 = vadd.f32 %v1108, %v1148
    %v1150 = vpop.f32.mrf.mxu0
    %v1151 = vpop.f32.mrf.mxu0
    %1152 = vdwg.mxu0
    %1153 = vmatprep.subr.bf16.mxu0 %v822
    %1154 = vmatpush1.bf16.msra.mxu0 %v821
    %1155 = vmatprep.subr.bf16.mxu0 %v820
    %1156 = vmatpush1.bf16.msra.mxu0 %v819
    %1157 = vmatprep.subr.bf16.mxu0 %v818
    %1158 = vmatpush1.bf16.msra.mxu0 %v817
    %1159 = vmatprep.subr.bf16.mxu0 %v816
    %1160 = vmatpush1.bf16.msra.mxu0 %v815
    %1161 = vmatprep.subr.bf16.mxu0 %v814
    %1162 = vmatpush1.bf16.msra.mxu0 %v813
    %1163 = vmatprep.subr.bf16.mxu0 %v812
    %1164 = vmatpush1.bf16.msra.mxu0 %v811
    %1165 = vmatprep.subr.bf16.mxu0 %v810
    %1166 = vmatpush1.bf16.msra.mxu0 %v809
    %1167 = vmatprep.subr.bf16.mxu0 %v808
    %1168 = vmatpush1.bf16.msra.mxu0 %v807
    %1169 = vmatprep.subr.bf16.mxu0 %v838
    %1170 = vmatpush2.bf16.msra.mxu0 %v837
    %1171 = vmatprep.subr.bf16.mxu0 %v836
    %1172 = vmatpush2.bf16.msra.mxu0 %v835
    %1173 = vmatprep.subr.bf16.mxu0 %v834
    %1174 = vmatpush2.bf16.msra.mxu0 %v833
    %1175 = vmatprep.subr.bf16.mxu0 %v832
    %1176 = vmatpush2.bf16.msra.mxu0 %v831
    %1177 = vmatprep.subr.bf16.mxu0 %v830
    %1178 = vmatpush2.bf16.msra.mxu0 %v829
    %1179 = vmatprep.subr.bf16.mxu0 %v828
    %1180 = vmatpush2.bf16.msra.mxu0 %v827
    %1181 = vmatprep.subr.bf16.mxu0 %v826
    %1182 = vmatpush2.bf16.msra.mxu0 %v825
    %1183 = vmatprep.subr.bf16.mxu0 %v824
    %1184 = vmatpush2.bf16.msra.mxu0 %v823
    %1185 = vmatprep.mubr.bf16.mxu0 %v77
    %1186 = vmatmul.mubr.bf16.gmra.mxu0 %v76
    %v1187 = vpop.f32.mrf.mxu0
    %v1188 = vadd.f32 %v1147, %v1187
    %v1189 = vpop.f32.mrf.mxu0
    %v1190 = vadd.f32 %v1149, %v1189
    %v1191 = vpop.f32.mrf.mxu0
    %v1192 = vpop.f32.mrf.mxu0
    %1193 = vdwg.mxu0
    %1194 = vmatprep.subr.bf16.mxu0 %v854
    %1195 = vmatpush1.bf16.msra.mxu0 %v853
    %1196 = vmatprep.subr.bf16.mxu0 %v852
    %1197 = vmatpush1.bf16.msra.mxu0 %v851
    %1198 = vmatprep.subr.bf16.mxu0 %v850
    %1199 = vmatpush1.bf16.msra.mxu0 %v849
    %1200 = vmatprep.subr.bf16.mxu0 %v848
    %1201 = vmatpush1.bf16.msra.mxu0 %v847
    %1202 = vmatprep.subr.bf16.mxu0 %v846
    %1203 = vmatpush1.bf16.msra.mxu0 %v845
    %1204 = vmatprep.subr.bf16.mxu0 %v844
    %1205 = vmatpush1.bf16.msra.mxu0 %v843
    %1206 = vmatprep.subr.bf16.mxu0 %v842
    %1207 = vmatpush1.bf16.msra.mxu0 %v841
    %1208 = vmatprep.subr.bf16.mxu0 %v840
    %1209 = vmatpush1.bf16.msra.mxu0 %v839
    %1210 = vmatprep.subr.bf16.mxu0 %v870
    %1211 = vmatpush2.bf16.msra.mxu0 %v869
    %1212 = vmatprep.subr.bf16.mxu0 %v868
    %1213 = vmatpush2.bf16.msra.mxu0 %v867
    %1214 = vmatprep.subr.bf16.mxu0 %v866
    %1215 = vmatpush2.bf16.msra.mxu0 %v865
    %1216 = vmatprep.subr.bf16.mxu0 %v864
    %1217 = vmatpush2.bf16.msra.mxu0 %v863
    %1218 = vmatprep.subr.bf16.mxu0 %v862
    %1219 = vmatpush2.bf16.msra.mxu0 %v861
    %1220 = vmatprep.subr.bf16.mxu0 %v860
    %1221 = vmatpush2.bf16.msra.mxu0 %v859
    %1222 = vmatprep.subr.bf16.mxu0 %v858
    %1223 = vmatpush2.bf16.msra.mxu0 %v857
    %1224 = vmatprep.subr.bf16.mxu0 %v856
    %1225 = vmatpush2.bf16.msra.mxu0 %v855
    %1226 = vmatprep.mubr.bf16.mxu0 %v79
    %1227 = vmatmul.mubr.bf16.gmra.mxu0 %v78
    %v1228 = vpop.f32.mrf.mxu0
    %v1229 = vadd.f32 %v1188, %v1228
    %v1230 = vpop.f32.mrf.mxu0
    %v1231 = vadd.f32 %v1190, %v1230
    %v1232 = vpop.f32.mrf.mxu0
    %v1233 = vpop.f32.mrf.mxu0
    %1234 = vdwg.mxu0
    %1235 = vmatprep.subr.bf16.mxu0 %v886
    %1236 = vmatpush1.bf16.msra.mxu0 %v885
    %1237 = vmatprep.subr.bf16.mxu0 %v884
    %1238 = vmatpush1.bf16.msra.mxu0 %v883
    %1239 = vmatprep.subr.bf16.mxu0 %v882
    %1240 = vmatpush1.bf16.msra.mxu0 %v881
    %1241 = vmatprep.subr.bf16.mxu0 %v880
    %1242 = vmatpush1.bf16.msra.mxu0 %v879
    %1243 = vmatprep.subr.bf16.mxu0 %v878
    %1244 = vmatpush1.bf16.msra.mxu0 %v877
    %1245 = vmatprep.subr.bf16.mxu0 %v876
    %1246 = vmatpush1.bf16.msra.mxu0 %v875
    %1247 = vmatprep.subr.bf16.mxu0 %v874
    %1248 = vmatpush1.bf16.msra.mxu0 %v873
    %1249 = vmatprep.subr.bf16.mxu0 %v872
    %1250 = vmatpush1.bf16.msra.mxu0 %v871
    %1251 = vmatprep.subr.bf16.mxu0 %v902
    %1252 = vmatpush2.bf16.msra.mxu0 %v901
    %1253 = vmatprep.subr.bf16.mxu0 %v900
    %1254 = vmatpush2.bf16.msra.mxu0 %v899
    %1255 = vmatprep.subr.bf16.mxu0 %v898
    %1256 = vmatpush2.bf16.msra.mxu0 %v897
    %1257 = vmatprep.subr.bf16.mxu0 %v896
    %1258 = vmatpush2.bf16.msra.mxu0 %v895
    %1259 = vmatprep.subr.bf16.mxu0 %v894
    %1260 = vmatpush2.bf16.msra.mxu0 %v893
    %1261 = vmatprep.subr.bf16.mxu0 %v892
    %1262 = vmatpush2.bf16.msra.mxu0 %v891
    %1263 = vmatprep.subr.bf16.mxu0 %v890
    %1264 = vmatpush2.bf16.msra.mxu0 %v889
    %1265 = vmatprep.subr.bf16.mxu0 %v888
    %1266 = vmatpush2.bf16.msra.mxu0 %v887
    %1267 = vmatprep.mubr.bf16.mxu0 %v81
    %1268 = vmatmul.mubr.bf16.gmra.mxu0 %v80
    %v1269 = vpop.f32.mrf.mxu0
    %v1270 = vadd.f32 %v1229, %v1269
    %v1271 = vpop.f32.mrf.mxu0
    %v1272 = vadd.f32 %v1231, %v1271
    %v1273 = vpop.f32.mrf.mxu0
    %v1274 = vpop.f32.mrf.mxu0
    %1275 = vdwg.mxu0
    %1276 = vmatprep.subr.bf16.mxu0 0
    %1277 = vmatpush1.bf16.msra.mxu0 0
    %1278 = vmatprep.subr.bf16.mxu0 0
    %1279 = vmatpush1.bf16.msra.mxu0 0
    %1280 = vmatprep.subr.bf16.mxu0 0
    %1281 = vmatpush1.bf16.msra.mxu0 0
    %1282 = vmatprep.subr.bf16.mxu0 0
    %1283 = vmatpush1.bf16.msra.mxu0 0
    %1284 = vmatprep.subr.bf16.mxu0 0
    %1285 = vmatpush1.bf16.msra.mxu0 0
    %1286 = vmatprep.subr.bf16.mxu0 0
    %1287 = vmatpush1.bf16.msra.mxu0 0
    %1288 = vmatprep.subr.bf16.mxu0 0
    %1289 = vmatpush1.bf16.msra.mxu0 0
    %1290 = vmatprep.subr.bf16.mxu0 %v904
    %1291 = vmatpush1.bf16.msra.mxu0 %v903
    %1292 = vmatprep.subr.bf16.mxu0 0
    %1293 = vmatpush2.bf16.msra.mxu0 0
    %1294 = vmatprep.subr.bf16.mxu0 0
    %1295 = vmatpush2.bf16.msra.mxu0 0
    %1296 = vmatprep.subr.bf16.mxu0 0
    %1297 = vmatpush2.bf16.msra.mxu0 0
    %1298 = vmatprep.subr.bf16.mxu0 0
    %1299 = vmatpush2.bf16.msra.mxu0 0
    %1300 = vmatprep.subr.bf16.mxu0 0
    %1301 = vmatpush2.bf16.msra.mxu0 0
    %1302 = vmatprep.subr.bf16.mxu0 0
    %1303 = vmatpush2.bf16.msra.mxu0 0
    %1304 = vmatprep.subr.bf16.mxu0 0
    %1305 = vmatpush2.bf16.msra.mxu0 0
    %1306 = vmatprep.subr.bf16.mxu0 0
    %1307 = vmatpush2.bf16.msra.mxu0 0
    %1308 = vmatprep.mubr.bf16.mxu0 0
    %1309 = vmatmul.mubr.bf16.gmra.mxu0 %v1069
    %v1310 = vpop.f32.mrf.mxu0
    %v1311 = vadd.f32 %v1270, %v1310
    %v1312 = vpop.f32.mrf.mxu0
    %v1313 = vadd.f32 %v1272, %v1312
    %v1314 = vpop.f32.mrf.mxu0
    %v1315 = vpop.f32.mrf.mxu0
    %1316 = vdwg.mxu0
    %v1317 = vmax.f32 %v1311, 0.0
    %v1318 = vmax.f32 %v1313, 0.0
    %v1319 = vpack.c.bf16 %v1317, %v1317
    %v1320 = vpack.c.bf16 %v1318, %v1318
    %v1321 = vld [vmem:[#allocation7] sm:$0xf]
    %v1322 = vld [vmem:[#allocation7 + $0x4] sm:$0xf]
    %v1323 = vld [vmem:[#allocation7 + $0x8] sm:$0xf]
    %v1324 = vld [vmem:[#allocation7 + $0xc] sm:$0xf]
    %v1325 = vld [vmem:[#allocation7 + $0x10] sm:$0xf]
    %v1326 = vld [vmem:[#allocation7 + $0x14] sm:$0xf]
    %v1327 = vld [vmem:[#allocation7 + $0x18] sm:$0xf]
    %v1328 = vld [vmem:[#allocation7 + $0x1c] sm:$0xf]
    %v1329 = vld [vmem:[#allocation7 + $0x20] sm:$0xf]
    %v1330 = vld [vmem:[#allocation7 + $0x24] sm:$0xf]
    %v1331 = vld [vmem:[#allocation7 + $0x28] sm:$0xf]
    %v1332 = vld [vmem:[#allocation7 + $0x2c] sm:$0xf]
    %v1333 = vld [vmem:[#allocation7 + $0x30] sm:$0xf]
    %v1334 = vld [vmem:[#allocation7 + $0x34] sm:$0xf]
    %v1335 = vld [vmem:[#allocation7 + $0x38] sm:$0xf]
    %v1336 = vld [vmem:[#allocation7 + $0x3c] sm:$0xf]
    %v1337 = vld [vmem:[#allocation7 + $0x40] sm:$0xf]
    %v1338 = vld [vmem:[#allocation7 + $0x44] sm:$0xf]
    %v1339 = vld [vmem:[#allocation7 + $0x48] sm:$0xf]
    %v1340 = vld [vmem:[#allocation7 + $0x4c] sm:$0xf]
    %v1341 = vld [vmem:[#allocation7 + $0x50] sm:$0xf]
    %v1342 = vld [vmem:[#allocation7 + $0x54] sm:$0xf]
    %v1343 = vld [vmem:[#allocation7 + $0x58] sm:$0xf]
    %v1344 = vld [vmem:[#allocation7 + $0x5c] sm:$0xf]
    %v1345 = vld [vmem:[#allocation7 + $0x60] sm:$0xf]
    %v1346 = vld [vmem:[#allocation7 + $0x64] sm:$0xf]
    %v1347 = vld [vmem:[#allocation7 + $0x68] sm:$0xf]
    %v1348 = vld [vmem:[#allocation7 + $0x6c] sm:$0xf]
    %v1349 = vld [vmem:[#allocation7 + $0x70] sm:$0xf]
    %v1350 = vld [vmem:[#allocation7 + $0x74] sm:$0xf]
    %v1351 = vld [vmem:[#allocation7 + $0x78] sm:$0xf]
    %v1352 = vld [vmem:[#allocation7 + $0x7c] sm:$0xf]
    %v1353 = vld [vmem:[%s4] sm:$0x1]
    %v1355 = vlaneseq
    %v1356 = vshrl.u32 %v1355, 7
    %v1357 = vsub.s32 0, %v1356
    %v1358 = vrot.slane %v1353, %v1357
    %v1392 = vunpack.c.l.b16 %v1321
    %v1393 = vunpack.c.l.b16 %v1322
    %v1394 = vunpack.c.l.b16 %v1323
    %v1395 = vunpack.c.l.b16 %v1324
    %v1396 = vunpack.c.l.b16 %v1325
    %v1397 = vunpack.c.l.b16 %v1326
    %v1398 = vunpack.c.l.b16 %v1327
    %v1399 = vunpack.c.l.b16 %v1328
    %v1400 = vunpack.c.l.b16 %v1329
    %v1401 = vunpack.c.l.b16 %v1330
    %v1402 = vunpack.c.l.b16 %v1331
    %v1403 = vunpack.c.l.b16 %v1332
    %v1404 = vunpack.c.l.b16 %v1333
    %v1405 = vunpack.c.l.b16 %v1334
    %v1406 = vunpack.c.l.b16 %v1335
    %v1407 = vunpack.c.l.b16 %v1336
    %v1408 = vunpack.c.l.b16 %v1337
    %v1409 = vunpack.c.l.b16 %v1338
    %v1410 = vunpack.c.l.b16 %v1339
    %v1411 = vunpack.c.l.b16 %v1340
    %v1412 = vunpack.c.l.b16 %v1341
    %v1413 = vunpack.c.l.b16 %v1342
    %v1414 = vunpack.c.l.b16 %v1343
    %v1415 = vunpack.c.l.b16 %v1344
    %v1416 = vunpack.c.l.b16 %v1345
    %v1417 = vunpack.c.l.b16 %v1346
    %v1418 = vunpack.c.l.b16 %v1347
    %v1419 = vunpack.c.l.b16 %v1348
    %v1420 = vunpack.c.l.b16 %v1349
    %v1421 = vunpack.c.l.b16 %v1350
    %v1422 = vunpack.c.l.b16 %v1351
    %v1423 = vunpack.c.l.b16 %v1352
    %v1424 = vpack.c.b16 %v1393, %v1392
    %v1425 = vpack.c.b16 %v1395, %v1394
    %v1426 = vpack.c.b16 %v1397, %v1396
    %v1427 = vpack.c.b16 %v1399, %v1398
    %v1428 = vpack.c.b16 %v1401, %v1400
    %v1429 = vpack.c.b16 %v1403, %v1402
    %v1430 = vpack.c.b16 %v1405, %v1404
    %v1431 = vpack.c.b16 %v1407, %v1406
    %v1432 = vpack.c.b16 %v1409, %v1408
    %v1433 = vpack.c.b16 %v1411, %v1410
    %v1434 = vpack.c.b16 %v1413, %v1412
    %v1435 = vpack.c.b16 %v1415, %v1414
    %v1436 = vpack.c.b16 %v1417, %v1416
    %v1437 = vpack.c.b16 %v1419, %v1418
    %v1438 = vpack.c.b16 %v1421, %v1420
    %v1439 = vpack.c.b16 %v1423, %v1422
    %1456 = vmatprep.subr.bf16.mxu0 0
    %1457 = vmatpush1.bf16.msra.mxu0 %v1431
    %1458 = vmatprep.subr.bf16.mxu0 0
    %1459 = vmatpush1.bf16.msra.mxu0 %v1430
    %1460 = vmatprep.subr.bf16.mxu0 0
    %1461 = vmatpush1.bf16.msra.mxu0 %v1429
    %1462 = vmatprep.subr.bf16.mxu0 0
    %1463 = vmatpush1.bf16.msra.mxu0 %v1428
    %1464 = vmatprep.subr.bf16.mxu0 0
    %1465 = vmatpush1.bf16.msra.mxu0 %v1427
    %1466 = vmatprep.subr.bf16.mxu0 0
    %1467 = vmatpush1.bf16.msra.mxu0 %v1426
    %1468 = vmatprep.subr.bf16.mxu0 0
    %1469 = vmatpush1.bf16.msra.mxu0 %v1425
    %1470 = vmatprep.subr.bf16.mxu0 0
    %1471 = vmatpush1.bf16.msra.mxu0 %v1424
    %1472 = vmatprep.subr.bf16.mxu0 0
    %1473 = vmatpush2.bf16.msra.mxu0 %v1439
    %1474 = vmatprep.subr.bf16.mxu0 0
    %1475 = vmatpush2.bf16.msra.mxu0 %v1438
    %1476 = vmatprep.subr.bf16.mxu0 0
    %1477 = vmatpush2.bf16.msra.mxu0 %v1437
    %1478 = vmatprep.subr.bf16.mxu0 0
    %1479 = vmatpush2.bf16.msra.mxu0 %v1436
    %1480 = vmatprep.subr.bf16.mxu0 0
    %1481 = vmatpush2.bf16.msra.mxu0 %v1435
    %1482 = vmatprep.subr.bf16.mxu0 0
    %1483 = vmatpush2.bf16.msra.mxu0 %v1434
    %1484 = vmatprep.subr.bf16.mxu0 0
    %1485 = vmatpush2.bf16.msra.mxu0 %v1433
    %1486 = vmatprep.subr.bf16.mxu0 0
    %1487 = vmatpush2.bf16.msra.mxu0 %v1432
    %1488 = vmatprep.mubr.bf16.mxu0 %v1320
    %1489 = vmatmul.mubr.bf16.gmra.mxu0 %v1319
    %v1490 = vpop.f32.mrf.mxu0
    %v1491 = vadd.f32 %v1358, %v1490
    %v1492 = vpop.f32.mrf.mxu0
    %v1493 = vpop.f32.mrf.mxu0
    %v1494 = vpop.f32.mrf.mxu0
    %1495 = vdwg.mxu0
    %v1496 = vmax.f32 %v1491, 0.0
    %1497 = vst [vmem:[#allocation8] sm:$0xff] %v1496
    // Predicated region
    $region34: #{net_forward.1} parent=1 // pred_check
      _
    $region35: #{net_forward.1} parent=1 // pred_check_branch
      %1499 = sbr.rel (0) target = $region37
    $region36: #{net_forward.1} parent=1 // pred_region
      %s1501 = ssub.s32 128, 128
      %1502 = vsyncadd [#allocation4], %s1501
      %s1504 = sshll.u32 [#allocation8], 4
      %s1505 = int_to_ptr.vmem [resolvable:$true] %s1504
      %1507 = dma.vmem_to_hbm [thread:$0]  %s1505, 128, %s5, [#allocation4]
    $region37: #{net_forward.1} parent=1 // pred_fallthru
      _
    // Predicated region
    $region38: #{net_forward.1} parent=1 // pred_check
      _
    $region39: #{net_forward.1} parent=1 // pred_check_branch
      %1509 = sbr.rel (0) target = $region41
    $region40: #{net_forward.1} parent=1 // pred_region
      %1510 = dma.done [#allocation4], 128
    $region41: #{net_forward.1} parent=1 // pred_fallthru
      _
    %1511 = vsyncpa [#allocation3], 1
    %1512 = vsyncpa [#allocation6], 1
    %1513 = vsyncpa [#allocation4], 1

</llo_original>
